<compile_context>
chip_gen: v7x
topology: tpu7x:2x2x1
jax: 0.10.0
libtpu: 0.0.40
codegen_flags: <defaults>
</compile_context>

<pallas_src>
import functools
import math

import jax
import jax.numpy as jnp
from jax.experimental import pallas as pl
from jax.experimental.pallas import tpu as pltpu


def _build_fixed_pe(embedding_dim: int, max_length: int = 512,
                    dtype=jnp.float32) -> jnp.ndarray:
    """Sinusoidal table, shape (max_length, 1, embedding_dim) like the torch buffer."""
    position = jnp.arange(0, max_length, dtype=jnp.float32)[:, None]          # (L, 1)
    div_term = jnp.exp(
        jnp.arange(0, embedding_dim, 2, dtype=jnp.float32)
        * (-math.log(10000.0) / embedding_dim)
    )
    pe = jnp.zeros((max_length, embedding_dim), dtype=jnp.float32)
    pe = pe.at[:, 0::2].set(jnp.sin(position * div_term))
    # Guard odd embedding_dim: the 1::2 slice has floor(E/2) columns.
    pe = pe.at[:, 1::2].set(jnp.cos(position * div_term[: embedding_dim // 2]))
    return pe[:, None, :].astype(dtype)                                        # (L, 1, E)


def _round_up(x: int, m: int) -> int:
    return ((x + m - 1) // m) * m


# ----------------------------- kernels ------------------------------------- #

def _pe_add_3d_kernel(x_ref, pe_ref, o_ref):
    # x: (ts, B, te), pe: (ts, te)  -> broadcast pe over the batch dim.
    o_ref[...] = x_ref[...] + pe_ref[...][:, None, :]


def _pe_add_flat_kernel(x_ref, pe_ref, o_ref, *, batch: int):
    # x: (ts, B*E), pe: (ts, E)  -> repeat pe B times along the lane dim.
    o_ref[...] = x_ref[...] + jnp.tile(pe_ref[...], (1, batch))


# --------------------------- tile planning --------------------------------- #

def _plan_tiles(S: int, B: int, E: int, itemsize: int, budget: int,
                min_grid_steps: int, lane_flat: bool):
    """Returns (ts, te, padded_vmem_footprint_bytes). Padding-aware accounting."""
    min_ts = min(8, S)

    if lane_flat:
        # x/out rows are lane-dense (B*E multiple of 128); pe lane dim pads to 128.
        te = E
        row = (2 * B * E + _round_up(E, 128)) * itemsize
    else:
        pad_b = _round_up(B, 8)

        def row_bytes(te_):
            pte = _round_up(te_, 128)
            return (2 * pad_b * pte + pte) * itemsize

        te = E
        # If even a minimal seq tile at full E blows the budget, tile E too.
        if 2 * min_ts * row_bytes(E) > budget and E % 128 == 0 and E > 128:
            for cand in range(E - 128, 0, -128):
                if E % cand == 0 and 2 * min_ts * row_bytes(cand) <= budget:
                    te = cand
                    break
            else:
                te = 128
        row = row_bytes(te)

    ts = max(min_ts, budget // (2 * row))          # factor 2: double buffering
    ts = min(ts, S)
    if ts > 8:
        ts -= ts % 8
    # Keep enough grid steps so the pipeline (and v7x's 2 TCs) stay busy.
    if S >= min_grid_steps * 8:
        cap = max(8, (pl.cdiv(S, min_grid_steps) // 8) * 8)
        ts = min(ts, cap)

    footprint = 2 * ts * row
    return ts, te, footprint


# ------------------------------ wrapper ------------------------------------ #

def fixed_positional_encoding(x: jnp.ndarray, pe: jnp.ndarray, *,
                              force_pallas: bool = False,
                              vmem_budget_bytes: int = 16 << 20,
                              min_grid_steps: int = 8,
                              donate_x: bool = False) -> jnp.ndarray:
    """x: (S, B, E); pe: (max_length, 1, E) or (max_length, E). Returns x + pe[:S]."""
    S, B, E = x.shape
    if pe.ndim == 3:
        L, one, E_pe = pe.shape
        assert one == 1, "pe middle dim must be 1"
        pe2d = pe.reshape(L, E_pe)            # size-1 squeeze: free, no HBM copy
    else:
        L, E_pe = pe.shape
        pe2d = pe
    assert E_pe == E and S <= L, "pe shape incompatible with x"

    if pe2d.dtype != x.dtype:
        # Fallback only; build pe in the activation dtype once in real models.
        pe2d = pe2d.astype(x.dtype)

    itemsize = jnp.dtype(x.dtype).itemsize

    # Tiny tensors: pallas_call launch overhead dominates -> let XLA fuse it.
    if not force_pallas and S * B * E * itemsize < (1 << 20):
        return x + pe2d[:S][:, None, :]

    lane_flat = (B < 8) and ((B * E) % 128 == 0)
    ts, te, footprint = _plan_tiles(S, B, E, itemsize, vmem_budget_bytes,
                                    min_grid_steps, lane_flat)

    # Explicit scoped-VMEM limit: real padded footprint + headroom, capped so it
    # stays inside v7x's 64 MiB per-TC physical VMEM.
    vmem_limit = int(min(max(2 * footprint, 16 << 20), 40 << 20))

    cost = pl.CostEstimate(flops=S * B * E, transcendentals=0,
                           bytes_accessed=(2 * S * B * E + S * E) * itemsize)
    io_alias = {0: 0} if donate_x else {}

    if ts % 8 != 0:
        # Only happens when S < 8: slice pe so its block equals its full dims
        # (keeps the (8,128) block constraint satisfied); S*E bytes, negligible.
        pe2d = pe2d[:S]

    if lane_flat:
        x2 = x.reshape(S, B * E)
        out = pl.pallas_call(
            functools.partial(_pe_add_flat_kernel, batch=B),
            out_shape=jax.ShapeDtypeStruct((S, B * E), x.dtype),
            grid=(pl.cdiv(S, ts),),
            in_specs=[
                pl.BlockSpec((ts, B * E), lambda i: (i, 0)),   # lane-dense x tile
                pl.BlockSpec((ts, E), lambda i: (i, 0)),       # dense 2-D pe tile
            ],
            out_specs=pl.BlockSpec((ts, B * E), lambda i: (i, 0)),
            compiler_params=pltpu.CompilerParams(
                dimension_semantics=("parallel",),
                vmem_limit_bytes=vmem_limit),
            cost_estimate=cost,
            input_output_aliases=io_alias,
        )(x2, pe2d)
        return out.reshape(S, B, E)

    if te == E:
        grid = (pl.cdiv(S, ts),)
        x_spec = pl.BlockSpec((ts, B, E), lambda i: (i, 0, 0))
        pe_spec = pl.BlockSpec((ts, E), lambda i: (i, 0))
        semantics = ("parallel",)
    else:
        grid = (pl.cdiv(S, ts), E // te)
        x_spec = pl.BlockSpec((ts, B, te), lambda i, j: (i, 0, j))
        pe_spec = pl.BlockSpec((ts, te), lambda i, j: (i, j))
        semantics = ("parallel", "parallel")

    return pl.pallas_call(
        _pe_add_3d_kernel,
        out_shape=jax.ShapeDtypeStruct((S, B, E), x.dtype),
        grid=grid,
        in_specs=[x_spec, pe_spec],
        out_specs=x_spec,
        compiler_params=pltpu.CompilerParams(
            dimension_semantics=semantics,
            vmem_limit_bytes=vmem_limit),
        cost_estimate=cost,
        input_output_aliases=io_alias,
    )(x, pe2d)


# ------------------------------- demo --------------------------------------- #

if __name__ == "__main__":
    key = jax.random.PRNGKey(0)

    # --- Case 1: module-sized toy shapes (3-D path, B<8, E not 128-multiple).
    S, B, E = 8, 2, 32
    pe = _build_fixed_pe(E, max_length=512)
    x = jax.random.normal(key, (S, B, E), dtype=jnp.float32)
    out = jax.block_until_ready(fixed_positional_encoding(x, pe, force_pallas=True))
    ref = x + pe[:S]
    assert out.shape == (S, B, E)
    assert jnp.allclose(out, ref, atol=1e-6), "case 1: mismatch vs reference"
    # Auto-fallback (tiny tensor -> plain XLA add) must agree too.
    out_auto = jax.block_until_ready(fixed_positional_encoding(x, pe))
    assert jnp.allclose(out_auto, ref, atol=1e-6), "case 1 (auto): mismatch"

    # --- Case 2: lane-dense flat path (B<8, B*E % 128 == 0), multi-step grid.
    S2, B2, E2 = 40, 2, 128
    pe2 = _build_fixed_pe(E2, max_length=512)
    x2 = jax.random.normal(jax.random.PRNGKey(1), (S2, B2, E2), dtype=jnp.float32)
    flat_row = (2 * B2 * E2 + 128) * 4
    tiny_budget = 8 * 2 * flat_row                         # -> ts = 8, grid = (5,)
    out2 = jax.block_until_ready(
        fixed_positional_encoding(x2, pe2, force_pallas=True,
                                  vmem_budget_bytes=tiny_budget))
    ref2 = x2 + pe2[:S2]
    assert jnp.allclose(out2, ref2, atol=1e-6), "case 2: mismatch vs reference"

    # --- Case 3: 3-D path with full sublanes (B = 8), single block.
    S3, B3, E3 = 16, 8, 128
    pe3 = _build_fixed_pe(E3, max_length=512)
    x3 = jax.random.normal(jax.random.PRNGKey(2), (S3, B3, E3), dtype=jnp.float32)
    out3 = jax.block_until_ready(fixed_positional_encoding(x3, pe3, force_pallas=True))
    ref3 = x3 + pe3[:S3]
    assert jnp.allclose(out3, ref3, atol=1e-6), "case 3: mismatch vs reference"

    # --- Case 4: forced E-tiling fallback (tiny budget -> te = 128, grid = (2, 2)).
    S4, B4, E4 = 16, 8, 256
    pe4 = _build_fixed_pe(E4, max_length=512)
    x4 = jax.random.normal(jax.random.PRNGKey(3), (S4, B4, E4), dtype=jnp.float32)
    out4 = jax.block_until_ready(
        fixed_positional_encoding(x4, pe4, force_pallas=True,
                                  vmem_budget_bytes=160_000))
    ref4 = x4 + pe4[:S4]
    assert jnp.allclose(out4, ref4, atol=1e-6), "case 4: mismatch vs reference"

    # --- Case 5: bf16 activations with pe built in the activation dtype (no cast).
    pe5 = _build_fixed_pe(E2, max_length=512, dtype=jnp.bfloat16)
    x5 = x2.astype(jnp.bfloat16)
    out5 = jax.block_until_ready(fixed_positional_encoding(x5, pe5, force_pallas=True))
    ref5 = x5 + pe5[:S2]
    assert jnp.allclose(out5.astype(jnp.float32), ref5.astype(jnp.float32),
                        atol=1e-2), "case 5: mismatch vs reference"

    print("KERNEL_OK")
</pallas_src>

<mosaic_0001>
module attributes {stable_mosaic.version = 11 : i64} {
  func.func @_pe_add_3d_kernel(%arg0: i32, %arg1: memref<8x2x32xf32, #tpu.memory_space<vmem>>, %arg2: memref<8x32xf32, #tpu.memory_space<vmem>>, %arg3: memref<8x2x32xf32, #tpu.memory_space<vmem>>) attributes {dimension_semantics = [#tpu.dimension_semantics<parallel>], iteration_bounds = array<i64: 1>, scalar_prefetch = 0 : i64, scratch_operands = 0 : i64, tpu.core_type = #tpu.core_type<tc>, window_params = [{transform_indices = @transform_0, window_bounds = array<i64: 8, 2, 32>}, {transform_indices = @transform_1, window_bounds = array<i64: 8, 32>}, {transform_indices = @transform_2, window_bounds = array<i64: 8, 2, 32>}]} {
    %c0 = arith.constant 0 : index
    %c0_0 = arith.constant 0 : index
    %c0_1 = arith.constant 0 : index
    %0 = vector.load %arg1[%c0, %c0_0, %c0_1] : memref<8x2x32xf32, #tpu.memory_space<vmem>>, vector<8x2x32xf32>
    %c0_2 = arith.constant 0 : index
    %c0_3 = arith.constant 0 : index
    %1 = vector.load %arg2[%c0_2, %c0_3] : memref<8x32xf32, #tpu.memory_space<vmem>>, vector<8x32xf32>
    %2 = vector.shape_cast %1 : vector<8x32xf32> to vector<8x1x32xf32>
    %3 = vector.broadcast %2 : vector<8x1x32xf32> to vector<8x2x32xf32>
    %4 = arith.addf %0, %3 : vector<8x2x32xf32>
    %c0_4 = arith.constant 0 : index
    %c0_5 = arith.constant 0 : index
    %c0_6 = arith.constant 0 : index
    %5 = vector.load %arg3[%c0_4, %c0_5, %c0_6] : memref<8x2x32xf32, #tpu.memory_space<vmem>>, vector<8x2x32xf32>
    tpu.vector_store %arg3[%c0_4, %c0_5, %c0_6], %4 {strides = array<i32>} : memref<8x2x32xf32, #tpu.memory_space<vmem>>, vector<8x2x32xf32>,
    return
  }
  func.func @transform_0(%arg0: i32) -> (i32, i32, i32) {
    %c0_i32 = arith.constant 0 : i32
    %c0_i32_0 = arith.constant 0 : i32
    %c0_i32_1 = arith.constant 0 : i32
    return %arg0, %c0_i32, %c0_i32_0 : i32, i32, i32
  }
  func.func @transform_1(%arg0: i32) -> (i32, i32) {
    %c0_i32 = arith.constant 0 : i32
    %c0_i32_0 = arith.constant 0 : i32
    return %arg0, %c0_i32 : i32, i32
  }
  func.func @transform_2(%arg0: i32) -> (i32, i32, i32) {
    %c0_i32 = arith.constant 0 : i32
    %c0_i32_0 = arith.constant 0 : i32
    %c0_i32_1 = arith.constant 0 : i32
    return %arg0, %c0_i32, %c0_i32_0 : i32, i32, i32
  }
}

</mosaic_0001>

<llo_original>
// kernel: tpu_custom_call.1
$region0: #{tpu_custom_call.1}
  #allocation0 [shape = 'u32[]', space=smem, size = 0x4, offset = 0x4, fixed_abs, tag = 'smem constant byte address 0x4 - core index']
  #allocation1 [shape = 'u32[144,128]{1,0:T(1,128)}', space=vmem, size = 0x12000, scoped, tag = 'internal scratch']
  %s0 = inlined_call_operand.vmem [shape: f32[8,2,32], index: 0, kind: input, shape index: {}]
  %s1 = inlined_call_operand.vmem [shape: f32[512,32], index: 1, kind: input, shape index: {}]
  %s2 = inlined_call_operand.hbm [shape: f32[8,2,32], index: 2, kind: output, shape index: {}]
  %s3 = sld [smem:[#allocation0]]
  $region18: #{tpu_custom_call.1} parent=0
    _
  %s5 = ssub.s32 1, %s3
  %s6 = scalar_select 0, %s5, %s3
  $region1: #{tpu_custom_call.1} parent=0
    #allocation2 [shape = 'u8[8192]{0}', space=vmem, size = 0x2000, scoped, tag = 'output window, operand 0, single buffered']
    #allocation3 [shape = 's32[1]{0}', space=sflag, size = 0x4, scoped, tag = 'scoped memory for tpu_custom_call.1']
    %7 = vsyncpa [#allocation3], 0
    // Predicated region
    $region2: #{tpu_custom_call.1} parent=1 // pred_check
      _
    $region3: #{tpu_custom_call.1} parent=1 // pred_check_branch
      %9 = sbr.rel (0) target = $region5
    $region4: #{tpu_custom_call.1} parent=1 // pred_region
      _
    $region5: #{tpu_custom_call.1} parent=1 // pred_fallthru
      _
    // Predicated region
    $region6: #{tpu_custom_call.1} parent=1 // pred_check
      _
    $region7: #{tpu_custom_call.1} parent=1 // pred_check_branch
      %11 = sbr.rel (0) target = $region9
    $region8: #{tpu_custom_call.1} parent=1 // pred_region
      _
    $region9: #{tpu_custom_call.1} parent=1 // pred_fallthru
      _
    %v12 = vld [vmem:[%s0] sm:$0x3]
    %v13 = vld [vmem:[%s0 + $0x2] sm:$0x3]
    %v14 = vld [vmem:[%s0 + $0x4] sm:$0x3]
    %v15 = vld [vmem:[%s0 + $0x6] sm:$0x3]
    %v16 = vld [vmem:[%s0 + $0x8] sm:$0x3]
    %v17 = vld [vmem:[%s0 + $0xa] sm:$0x3]
    %v18 = vld [vmem:[%s0 + $0xc] sm:$0x3]
    %v19 = vld [vmem:[%s0 + $0xe] sm:$0x3]
    %v20 = vld [vmem:[%s1] sm:$0xff]
    %v22 = vcombine.high %v20, %v20
    %v24 = vunpack.c.l.s4 1966171168
    %v25 = vunpack.c.0.s8 %v24
    %v26 = vlaneseq
    %v27 = vshrl.u32 %v26, 7
    %v28 = vsub.s32 %v25, %v27
    %v29 = vrot.slane %v20, %v28
    %v31 = vunpack.c.l.s4 1966171168
    %v32 = vunpack.c.0.s8 %v31
    %v33 = vlaneseq
    %v34 = vshrl.u32 %v33, 7
    %v35 = vsub.s32 %v32, %v34
    %v36 = vrot.slane %v22, %v35
    %v37 = vcombine.high %v29, %v29
    %v38 = vcombine.high %v36, %v36
    %v40 = vunpack.c.l.s4 1966171168
    %v41 = vunpack.c.0.s8 %v40
    %v42 = vlaneseq
    %v43 = vshrl.u32 %v42, 7
    %v44 = vsub.s32 %v41, %v43
    %v45 = vrot.slane %v29, %v44
    %v47 = vunpack.c.l.s4 1966171168
    %v48 = vunpack.c.0.s8 %v47
    %v49 = vlaneseq
    %v50 = vshrl.u32 %v49, 7
    %v51 = vsub.s32 %v48, %v50
    %v52 = vrot.slane %v36, %v51
    %v54 = vunpack.c.l.s4 1966171168
    %v55 = vunpack.c.0.s8 %v54
    %v56 = vlaneseq
    %v57 = vshrl.u32 %v56, 7
    %v58 = vsub.s32 %v55, %v57
    %v59 = vrot.slane %v37, %v58
    %v61 = vunpack.c.l.s4 1966171168
    %v62 = vunpack.c.0.s8 %v61
    %v63 = vlaneseq
    %v64 = vshrl.u32 %v63, 7
    %v65 = vsub.s32 %v62, %v64
    %v66 = vrot.slane %v38, %v65
    %v67 = vcombine.high %v45, %v45
    %v68 = vcombine.high %v52, %v52
    %v69 = vcombine.high %v59, %v59
    %v70 = vcombine.high %v66, %v66
    %v71 = vlaneseq
    %v72 = vshrl.u32 %v71, 7
    %v73 = vsub.s32 0, %v72
    %v74 = vrot.slane %v45, %v73
    %v75 = vlaneseq
    %v76 = vshrl.u32 %v75, 7
    %v77 = vsub.s32 0, %v76
    %v78 = vrot.slane %v59, %v77
    %v79 = vlaneseq
    %v80 = vshrl.u32 %v79, 7
    %v81 = vsub.s32 0, %v80
    %v82 = vrot.slane %v67, %v81
    %v83 = vlaneseq
    %v84 = vshrl.u32 %v83, 7
    %v85 = vsub.s32 0, %v84
    %v86 = vrot.slane %v69, %v85
    %v87 = vlaneseq
    %v88 = vshrl.u32 %v87, 7
    %v89 = vsub.s32 0, %v88
    %v90 = vrot.slane %v52, %v89
    %v91 = vlaneseq
    %v92 = vshrl.u32 %v91, 7
    %v93 = vsub.s32 0, %v92
    %v94 = vrot.slane %v66, %v93
    %v95 = vlaneseq
    %v96 = vshrl.u32 %v95, 7
    %v97 = vsub.s32 0, %v96
    %v98 = vrot.slane %v68, %v97
    %v99 = vlaneseq
    %v100 = vshrl.u32 %v99, 7
    %v101 = vsub.s32 0, %v100
    %v102 = vrot.slane %v70, %v101
    %v111 = vadd.f32 %v12, %v74
    %v112 = vadd.f32 %v13, %v78
    %v113 = vadd.f32 %v14, %v82
    %v114 = vadd.f32 %v15, %v86
    %v115 = vadd.f32 %v16, %v90
    %v116 = vadd.f32 %v17, %v94
    %v117 = vadd.f32 %v18, %v98
    %v118 = vadd.f32 %v19, %v102
    %vm119 = vcmask 254976
    %120 = vst.msk [vmem:[#allocation2] sm:$0x3] %vm119, %v111
    %121 = vst.msk [vmem:[#allocation2 + $0x2] sm:$0x3] %vm119, %v112
    %122 = vst.msk [vmem:[#allocation2 + $0x4] sm:$0x3] %vm119, %v113
    %123 = vst.msk [vmem:[#allocation2 + $0x6] sm:$0x3] %vm119, %v114
    %124 = vst.msk [vmem:[#allocation2 + $0x8] sm:$0x3] %vm119, %v115
    %125 = vst.msk [vmem:[#allocation2 + $0xa] sm:$0x3] %vm119, %v116
    %126 = vst.msk [vmem:[#allocation2 + $0xc] sm:$0x3] %vm119, %v117
    %127 = vst.msk [vmem:[#allocation2 + $0xe] sm:$0x3] %vm119, %v118
    // Predicated region
    $region10: #{tpu_custom_call.1} parent=1 // pred_check
      _
    $region11: #{tpu_custom_call.1} parent=1 // pred_check_branch
      %129 = sbr.rel (0) target = $region13
    $region12: #{tpu_custom_call.1} parent=1 // pred_region
      %s131 = ssub.s32 256, 256
      %132 = vsyncadd [#allocation3], %s131
      %s133 = sshll.u32 [#allocation2], 4
      %s134 = int_to_ptr.vmem [resolvable:$true] %s133
      %139 = dma.vmem_to_hbm [thread:$0]  %s134, 256, %s2, [#allocation3], 32, 32, 2
    $region13: #{tpu_custom_call.1} parent=1 // pred_fallthru
      _
    // Predicated region
    $region14: #{tpu_custom_call.1} parent=1 // pred_check
      _
    $region15: #{tpu_custom_call.1} parent=1 // pred_check_branch
      %141 = sbr.rel (0) target = $region17
    $region16: #{tpu_custom_call.1} parent=1 // pred_region
      %142 = dma.done [#allocation3], 256
    $region17: #{tpu_custom_call.1} parent=1 // pred_fallthru
      _
    %143 = vsyncpa [#allocation3], 1

</llo_original>
